<compile_context>
chip_gen: v5e
topology: v5e:2x2
jax: 0.10.0
libtpu: 0.0.40
codegen_flags: <defaults>
</compile_context>

<pallas_src>
import functools

import jax
import jax.numpy as jnp
from jax.experimental import pallas as pl
from jax.experimental.pallas import tpu as pltpu


def _round_up(x, m):
    return ((x + m - 1) // m) * m


# ---------------------------------------------------------------------------
# Path A: single-pass fused kernel (whole padded spatial extent in one block).
# Block shapes: x/out (Nb, C, Sp); weights are full tiny arrays.
# ---------------------------------------------------------------------------
def _scse_fused_kernel(x_ref, w1_ref, b1_ref, w2t_ref, b2t_ref, ws_ref, bs_ref,
                       o_ref, *, inv_s):
    xs = x_ref[...]                                                    # (Nb, C, Sp), input dtype

    # ---- cSE branch (VPU/XLU only) ----
    # Global average pool over spatial (lane) axis; f32 accumulation.
    # Padded columns are zero so they do not perturb the sum; divide by true S.
    pooled = jnp.sum(xs.astype(jnp.float32), axis=2, keepdims=True) * inv_s    # (Nb, C, 1)
    # conv1: h = relu(w1^T . pooled + b1)
    h = jnp.sum(w1_ref[...][None, :, :] * pooled, axis=1, keepdims=True)       # (Nb, 1, Cr)
    h = jnp.maximum(h + b1_ref[...][None, :, :], 0.0)
    # conv2 (weights pre-transposed in the wrapper): c_logit = w2t . h + b2t
    c_logit = jnp.sum(w2t_ref[...][None, :, :] * h, axis=2, keepdims=True)     # (Nb, C, 1)
    c_gate = jax.nn.sigmoid(c_logit + b2t_ref[...][None, :, :])                # (Nb, C, 1) f32

    # ---- sSE branch: channel reduction (sublane) instead of a degenerate matmul ----
    prod = xs * ws_ref[...][None, :, :].astype(xs.dtype)                       # (Nb, C, Sp)
    s_logit = (jnp.sum(prod.astype(jnp.float32), axis=1, keepdims=True)
               + bs_ref[...][None, :, :])                                      # (Nb, 1, Sp)
    s_gate = jax.nn.sigmoid(s_logit)                                           # (Nb, 1, Sp) f32

    # ---- combine (fused): x*cSE + x*sSE == x * (cSE + sSE); stays in input dtype ----
    gate = c_gate.astype(xs.dtype) + s_gate.astype(xs.dtype)                   # (Nb, C, Sp)
    o_ref[...] = (xs * gate).astype(o_ref.dtype)


# ---------------------------------------------------------------------------
# Path B: S-tiled combine kernel.  c_gate (N, C, 1) is precomputed; the kernel
# does only the sSE reduction + fused combine per (1, C, tS) tile.
# ---------------------------------------------------------------------------
def _scse_combine_kernel(x_ref, cg_ref, ws_ref, bs_ref, o_ref):
    xs = x_ref[...]                                                    # (1, C, tS), input dtype
    prod = xs * ws_ref[...][None, :, :].astype(xs.dtype)               # (1, C, tS)
    s_logit = (jnp.sum(prod.astype(jnp.float32), axis=1, keepdims=True)
               + bs_ref[...][None, :, :])                              # (1, 1, tS)
    s_gate = jax.nn.sigmoid(s_logit)                                   # (1, 1, tS) f32
    gate = cg_ref[...].astype(xs.dtype) + s_gate.astype(xs.dtype)      # (1, C, tS)
    o_ref[...] = (xs * gate).astype(o_ref.dtype)


def scse_attention(x_ncdhw, w1, b1, w2, b2, ws, bs, *, target_block_bytes=4 << 20):
    """SCSE attention.  x_ncdhw: (N, C, D, H, W); returns same shape/dtype.

    Parameter layouts (1x1x1 convs stored as dense matrices):
      w1: (C, Cr), b1: (1, Cr)   -- cSE conv1
      w2: (Cr, C), b2: (1, C)    -- cSE conv2
      ws: (C, 1),  bs: (1, 1)    -- sSE conv
    """
    N, C, D, H, W = x_ncdhw.shape
    S = D * H * W
    Cr = w1.shape[1]
    itemsize = x_ncdhw.dtype.itemsize

    x_ncs = x_ncdhw.reshape(N, C, S)                       # free, contiguous reshape

    s_pad128 = _round_up(S, 128)                           # lane-dense stores
    per_batch_bytes = C * s_pad128 * itemsize

    if per_batch_bytes <= target_block_bytes:
        # ----------------- Path A: single-pass fused -----------------
        Sp = s_pad128
        x_in = jnp.pad(x_ncs, ((0, 0), (0, 0), (0, Sp - S))) if Sp != S else x_ncs

        # Fuse batches per block (amortize per-step overhead) but keep >= 2 grid
        # steps when N >= 2 so both v7x TensorCores get work.
        nb_cap = max(1, target_block_bytes // per_batch_bytes)
        nb_cap = min(nb_cap, max(1, N // 2))
        Nb = max(d for d in range(1, N + 1) if N % d == 0 and d <= nb_cap)
        grid = (N // Nb,)

        w2t = jnp.transpose(w2)                            # (C, Cr)
        b2t = jnp.transpose(b2)                            # (C, 1)

        block_bytes = Nb * C * Sp * itemsize
        vmem_limit = int(min(64 << 20, max(32 << 20, 4 * block_bytes + (2 << 20))))

        kernel = functools.partial(_scse_fused_kernel, inv_s=1.0 / float(S))
        out = pl.pallas_call(
            kernel,
            out_shape=jax.ShapeDtypeStruct((N, C, Sp), x_ncdhw.dtype),
            grid_spec=pltpu.PrefetchScalarGridSpec(
                num_scalar_prefetch=0,
                grid=grid,
                in_specs=[
                    pl.BlockSpec((Nb, C, Sp), lambda b: (b, 0, 0)),   # x, lane-dense
                    pl.BlockSpec((C, Cr), lambda b: (0, 0)),          # cSE conv1 weight
                    pl.BlockSpec((1, Cr), lambda b: (0, 0)),          # cSE conv1 bias
                    pl.BlockSpec((C, Cr), lambda b: (0, 0)),          # cSE conv2 weight^T
                    pl.BlockSpec((C, 1), lambda b: (0, 0)),           # cSE conv2 bias^T
                    pl.BlockSpec((C, 1), lambda b: (0, 0)),           # sSE conv weight
                    pl.BlockSpec((1, 1), lambda b: (0, 0)),           # sSE conv bias
                ],
                out_specs=pl.BlockSpec((Nb, C, Sp), lambda b: (b, 0, 0)),
            ),
            compiler_params=pltpu.CompilerParams(
                dimension_semantics=("parallel",),
                vmem_limit_bytes=vmem_limit),
        )(x_in, w1, b1, w2t, b2t, ws, bs)

        out = out[:, :, :S] if Sp != S else out
        return out.reshape(N, C, D, H, W)

    # ----------------- Path B: two-pass, S-tiled -----------------
    # Tiny pre-pass (plain XLA): global average pool + cSE MLP -> c_gate (N, C, 1).
    pooled = jnp.mean(x_ncs.astype(jnp.float32), axis=2)                       # (N, C)
    h = jnp.maximum(pooled @ w1.astype(jnp.float32) + b1.astype(jnp.float32)[0], 0.0)
    c_gate = jax.nn.sigmoid(h @ w2.astype(jnp.float32) + b2.astype(jnp.float32)[0])
    c_gate = c_gate[:, :, None]                                                # (N, C, 1) f32

    # Spatial tile: multiple of 128 lanes, sized to the per-block byte target.
    tS = max(128, (target_block_bytes // (C * itemsize)) // 128 * 128)
    Sp = _round_up(S, tS)
    x_in = jnp.pad(x_ncs, ((0, 0), (0, 0), (0, Sp - S))) if Sp != S else x_ncs
    grid = (N, Sp // tS)

    block_bytes = C * tS * itemsize
    vmem_limit = int(min(64 << 20, max(32 << 20, 4 * block_bytes + (2 << 20))))

    out = pl.pallas_call(
        _scse_combine_kernel,
        out_shape=jax.ShapeDtypeStruct((N, C, Sp), x_ncdhw.dtype),
        grid_spec=pltpu.PrefetchScalarGridSpec(
            num_scalar_prefetch=0,
            grid=grid,
            in_specs=[
                pl.BlockSpec((1, C, tS), lambda b, s: (b, 0, s)),     # x tile
                pl.BlockSpec((1, C, 1), lambda b, s: (b, 0, 0)),      # c_gate, constant over S
                pl.BlockSpec((C, 1), lambda b, s: (0, 0)),            # sSE conv weight
                pl.BlockSpec((1, 1), lambda b, s: (0, 0)),            # sSE conv bias
            ],
            out_specs=pl.BlockSpec((1, C, tS), lambda b, s: (b, 0, s)),
        ),
        compiler_params=pltpu.CompilerParams(
            dimension_semantics=("parallel", "parallel"),
            vmem_limit_bytes=vmem_limit),
    )(x_in, c_gate, ws, bs)

    out = out[:, :, :S] if Sp != S else out
    return out.reshape(N, C, D, H, W)


def scse_reference(x, w1, b1, w2, b2, ws, bs):
    """Pure-JAX reference (mirrors the PyTorch forward)."""
    N, C, D, H, W = x.shape
    pooled = jnp.mean(x, axis=(2, 3, 4))                    # (N, C)
    h = jnp.maximum(pooled @ w1 + b1[0], 0.0)               # (N, Cr)
    c_gate = jax.nn.sigmoid(h @ w2 + b2[0])                 # (N, C)
    c_gate = c_gate[:, :, None, None, None]
    x_nsc = jnp.transpose(x.reshape(N, C, -1), (0, 2, 1))   # (N, S, C)
    s_gate = jax.nn.sigmoid(x_nsc @ ws + bs[0])             # (N, S, 1)
    s_gate = jnp.transpose(s_gate, (0, 2, 1)).reshape(N, 1, D, H, W)
    return x * c_gate + x * s_gate


if __name__ == "__main__":
    key = jax.random.PRNGKey(0)

    # Test configurations (all small):
    #   1) module defaults (in_channels=32, reduction=16), fused path, Nb=1
    #   2) N=4, tiny spatial (S=64 -> padded to 128): exercises padding + Nb=2 batch fusion
    #   3) same as (1) but with a tiny block budget, forcing the S-tiled two-pass path
    configs = [
        (2, 32, 16, 8, 8, 8, 4 << 20),
        (4, 32, 16, 4, 4, 4, 4 << 20),
        (2, 32, 16, 8, 8, 8, 1 << 15),
    ]

    ok = True
    for (N, C, reduction, D, H, W, tgt) in configs:
        Cr = C // reduction
        key, k_x, k1, k2, k3, k4, k5, k6 = jax.random.split(key, 8)

        x = jax.random.normal(k_x, (N, C, D, H, W), dtype=jnp.float32)
        w1 = jax.random.normal(k1, (C, Cr), dtype=jnp.float32) * 0.1   # cSE conv1: C -> C//r
        b1 = jax.random.normal(k2, (1, Cr), dtype=jnp.float32) * 0.1
        w2 = jax.random.normal(k3, (Cr, C), dtype=jnp.float32) * 0.1   # cSE conv2: C//r -> C
        b2 = jax.random.normal(k4, (1, C), dtype=jnp.float32) * 0.1
        ws = jax.random.normal(k5, (C, 1), dtype=jnp.float32) * 0.1    # sSE conv: C -> 1
        bs = jax.random.normal(k6, (1, 1), dtype=jnp.float32) * 0.1

        out = scse_attention(x, w1, b1, w2, b2, ws, bs, target_block_bytes=tgt)
        out = jax.block_until_ready(out)

        ref = scse_reference(x, w1, b1, w2, b2, ws, bs)
        ok &= (out.shape == x.shape) and (out.dtype == x.dtype)
        ok &= bool(jnp.allclose(out, ref, atol=1e-5, rtol=1e-5))
        assert ok, f"mismatch vs reference for config {(N, C, D, H, W, tgt)}"

    print("KERNEL_OK")
</pallas_src>

<mosaic_0001>
module attributes {stable_mosaic.version = 11 : i64} {
  func.func @_scse_fused_kernel(%arg0: i32, %arg1: memref<1x32x512xf32, #tpu.memory_space<vmem>>, %arg2: memref<32x2xf32, #tpu.memory_space<vmem>>, %arg3: memref<1x2xf32, #tpu.memory_space<vmem>>, %arg4: memref<32x2xf32, #tpu.memory_space<vmem>>, %arg5: memref<32x1xf32, #tpu.memory_space<vmem>>, %arg6: memref<32x1xf32, #tpu.memory_space<vmem>>, %arg7: memref<1x1xf32, #tpu.memory_space<vmem>>, %arg8: memref<1x32x512xf32, #tpu.memory_space<vmem>>) attributes {dimension_semantics = [#tpu.dimension_semantics<parallel>], iteration_bounds = array<i64: 2>, scalar_prefetch = 0 : i64, scratch_operands = 0 : i64, tpu.core_type = #tpu.core_type<tc>, window_params = [{transform_indices = @transform_0, window_bounds = array<i64: 1, 32, 512>}, {pipeline_mode = #tpu.pipeline_mode<synchronous>, transform_indices = @transform_1, window_bounds = array<i64: 32, 2>}, {pipeline_mode = #tpu.pipeline_mode<synchronous>, transform_indices = @transform_2, window_bounds = array<i64: 1, 2>}, {pipeline_mode = #tpu.pipeline_mode<synchronous>, transform_indices = @transform_3, window_bounds = array<i64: 32, 2>}, {pipeline_mode = #tpu.pipeline_mode<synchronous>, transform_indices = @transform_4, window_bounds = array<i64: 32, 1>}, {pipeline_mode = #tpu.pipeline_mode<synchronous>, transform_indices = @transform_5, window_bounds = array<i64: 32, 1>}, {pipeline_mode = #tpu.pipeline_mode<synchronous>, transform_indices = @transform_6, window_bounds = array<i64: 1, 1>}, {transform_indices = @transform_7, window_bounds = array<i64: 1, 32, 512>}]} {
    %c0 = arith.constant 0 : index
    %c0_0 = arith.constant 0 : index
    %c0_1 = arith.constant 0 : index
    %0 = vector.load %arg1[%c0, %c0_0, %c0_1] : memref<1x32x512xf32, #tpu.memory_space<vmem>>, vector<1x32x512xf32>
    %cst = arith.constant dense<0.000000e+00> : vector<1x32xf32>
    %1 = vector.multi_reduction <add>, %0, %cst [2] : vector<1x32x512xf32> to vector<1x32xf32>
    %2 = vector.shape_cast %1 : vector<1x32xf32> to vector<1x32x1xf32>
    %cst_2 = arith.constant 0.001953125 : f32
    %3 = vector.broadcast %cst_2 : f32 to vector<1x32x1xf32>
    %4 = arith.mulf %2, %3 : vector<1x32x1xf32>
    %c0_3 = arith.constant 0 : index
    %c0_4 = arith.constant 0 : index
    %5 = vector.load %arg2[%c0_3, %c0_4] : memref<32x2xf32, #tpu.memory_space<vmem>>, vector<32x2xf32>
    %6 = vector.shape_cast %5 : vector<32x2xf32> to vector<1x32x2xf32>
    %7 = vector.broadcast %4 : vector<1x32x1xf32> to vector<1x32x2xf32>
    %8 = arith.mulf %6, %7 : vector<1x32x2xf32>
    %cst_5 = arith.constant dense<0.000000e+00> : vector<1x2xf32>
    %9 = vector.multi_reduction <add>, %8, %cst_5 [1] : vector<1x32x2xf32> to vector<1x2xf32>
    %10 = vector.shape_cast %9 : vector<1x2xf32> to vector<1x1x2xf32>
    %c0_6 = arith.constant 0 : index
    %c0_7 = arith.constant 0 : index
    %11 = vector.load %arg3[%c0_6, %c0_7] : memref<1x2xf32, #tpu.memory_space<vmem>>, vector<1x2xf32>
    %12 = vector.shape_cast %11 : vector<1x2xf32> to vector<1x1x2xf32>
    %13 = arith.addf %10, %12 : vector<1x1x2xf32>
    %cst_8 = arith.constant 0.000000e+00 : f32
    %14 = vector.broadcast %cst_8 : f32 to vector<1x1x2xf32>
    %15 = arith.maximumf %13, %14 : vector<1x1x2xf32>
    %c0_9 = arith.constant 0 : index
    %c0_10 = arith.constant 0 : index
    %16 = vector.load %arg4[%c0_9, %c0_10] : memref<32x2xf32, #tpu.memory_space<vmem>>, vector<32x2xf32>
    %17 = vector.shape_cast %16 : vector<32x2xf32> to vector<1x32x2xf32>
    %18 = vector.broadcast %15 : vector<1x1x2xf32> to vector<1x32x2xf32>
    %19 = arith.mulf %17, %18 : vector<1x32x2xf32>
    %cst_11 = arith.constant dense<0.000000e+00> : vector<1x32xf32>
    %20 = vector.multi_reduction <add>, %19, %cst_11 [2] : vector<1x32x2xf32> to vector<1x32xf32>
    %21 = vector.shape_cast %20 : vector<1x32xf32> to vector<1x32x1xf32>
    %c0_12 = arith.constant 0 : index
    %c0_13 = arith.constant 0 : index
    %22 = vector.load %arg5[%c0_12, %c0_13] : memref<32x1xf32, #tpu.memory_space<vmem>>, vector<32x1xf32>
    %23 = vector.shape_cast %22 : vector<32x1xf32> to vector<1x32x1xf32>
    %24 = arith.addf %21, %23 : vector<1x32x1xf32>
    %25 = arith.negf %24 : vector<1x32x1xf32>
    %26 = math.exp %25 : vector<1x32x1xf32>
    %cst_14 = arith.constant 1.000000e+00 : f32
    %27 = vector.broadcast %cst_14 : f32 to vector<1x32x1xf32>
    %28 = arith.addf %27, %26 : vector<1x32x1xf32>
    %29 = arith.divf %27, %28 : vector<1x32x1xf32>
    %c0_15 = arith.constant 0 : index
    %c0_16 = arith.constant 0 : index
    %30 = vector.load %arg6[%c0_15, %c0_16] : memref<32x1xf32, #tpu.memory_space<vmem>>, vector<32x1xf32>
    %31 = vector.shape_cast %30 : vector<32x1xf32> to vector<1x32x1xf32>
    %32 = vector.broadcast %31 : vector<1x32x1xf32> to vector<1x32x512xf32>
    %33 = arith.mulf %0, %32 : vector<1x32x512xf32>
    %cst_17 = arith.constant dense<0.000000e+00> : vector<1x512xf32>
    %34 = vector.multi_reduction <add>, %33, %cst_17 [1] : vector<1x32x512xf32> to vector<1x512xf32>
    %35 = vector.shape_cast %34 : vector<1x512xf32> to vector<1x1x512xf32>
    %c0_18 = arith.constant 0 : index
    %c0_19 = arith.constant 0 : index
    %36 = vector.load %arg7[%c0_18, %c0_19] : memref<1x1xf32, #tpu.memory_space<vmem>>, vector<1x1xf32>
    %37 = vector.shape_cast %36 : vector<1x1xf32> to vector<1x1x1xf32>
    %38 = vector.broadcast %37 : vector<1x1x1xf32> to vector<1x1x512xf32>
    %39 = arith.addf %35, %38 : vector<1x1x512xf32>
    %40 = arith.negf %39 : vector<1x1x512xf32>
    %41 = math.exp %40 : vector<1x1x512xf32>
    %cst_20 = arith.constant 1.000000e+00 : f32
    %42 = vector.broadcast %cst_20 : f32 to vector<1x1x512xf32>
    %43 = arith.addf %42, %41 : vector<1x1x512xf32>
    %44 = arith.divf %42, %43 : vector<1x1x512xf32>
    %45 = vector.broadcast %29 : vector<1x32x1xf32> to vector<1x32x512xf32>
    %46 = vector.broadcast %44 : vector<1x1x512xf32> to vector<1x32x512xf32>
    %47 = arith.addf %45, %46 : vector<1x32x512xf32>
    %48 = arith.mulf %0, %47 : vector<1x32x512xf32>
    %c0_21 = arith.constant 0 : index
    %c0_22 = arith.constant 0 : index
    %c0_23 = arith.constant 0 : index
    %49 = vector.load %arg8[%c0_21, %c0_22, %c0_23] : memref<1x32x512xf32, #tpu.memory_space<vmem>>, vector<1x32x512xf32>
    tpu.vector_store %arg8[%c0_21, %c0_22, %c0_23], %48 {strides = array<i32>} : memref<1x32x512xf32, #tpu.memory_space<vmem>>, vector<1x32x512xf32>,
    return
  }
  func.func @transform_0(%arg0: i32) -> (i32, i32, i32) {
    %c0_i32 = arith.constant 0 : i32
    %c0_i32_0 = arith.constant 0 : i32
    %c0_i32_1 = arith.constant 0 : i32
    return %arg0, %c0_i32, %c0_i32_0 : i32, i32, i32
  }
  func.func @transform_1(%arg0: i32) -> (i32, i32) {
    %c0_i32 = arith.constant 0 : i32
    %c0_i32_0 = arith.constant 0 : i32
    %c0_i32_1 = arith.constant 0 : i32
    return %c0_i32, %c0_i32_0 : i32, i32
  }
  func.func @transform_2(%arg0: i32) -> (i32, i32) {
    %c0_i32 = arith.constant 0 : i32
    %c0_i32_0 = arith.constant 0 : i32
    %c0_i32_1 = arith.constant 0 : i32
    return %c0_i32, %c0_i32_0 : i32, i32
  }
  func.func @transform_3(%arg0: i32) -> (i32, i32) {
    %c0_i32 = arith.constant 0 : i32
    %c0_i32_0 = arith.constant 0 : i32
    %c0_i32_1 = arith.constant 0 : i32
    return %c0_i32, %c0_i32_0 : i32, i32
  }
  func.func @transform_4(%arg0: i32) -> (i32, i32) {
    %c0_i32 = arith.constant 0 : i32
    %c0_i32_0 = arith.constant 0 : i32
    %c0_i32_1 = arith.constant 0 : i32
    return %c0_i32, %c0_i32_0 : i32, i32
  }
  func.func @transform_5(%arg0: i32) -> (i32, i32) {
    %c0_i32 = arith.constant 0 : i32
    %c0_i32_0 = arith.constant 0 : i32
    %c0_i32_1 = arith.constant 0 : i32
    return %c0_i32, %c0_i32_0 : i32, i32
  }
  func.func @transform_6(%arg0: i32) -> (i32, i32) {
    %c0_i32 = arith.constant 0 : i32
    %c0_i32_0 = arith.constant 0 : i32
    %c0_i32_1 = arith.constant 0 : i32
    return %c0_i32, %c0_i32_0 : i32, i32
  }
  func.func @transform_7(%arg0: i32) -> (i32, i32, i32) {
    %c0_i32 = arith.constant 0 : i32
    %c0_i32_0 = arith.constant 0 : i32
    %c0_i32_1 = arith.constant 0 : i32
    return %arg0, %c0_i32, %c0_i32_0 : i32, i32, i32
  }
}

</mosaic_0001>

<llo_original>
// kernel: tpu_custom_call.1
$region0: #{tpu_custom_call.1}
  #allocation0 [shape = 'u32[]', space=smem, size = 0x4, offset = 0x4, fixed_abs, tag = 'smem constant byte address 0x4 - core index']
  #allocation1 [shape = 'u32[72,128]{1,0:T(1,128)}', space=vmem, size = 0x9000, scoped, tag = 'internal scratch']
  #allocation2 [shape = 'f32[1,1]{1,0:T(1,128)S(1)}', space=vmem, size = 0x200, scoped, tag = 'scoped memory for tpu_custom_call.1']
  %s0 = inlined_call_operand.hbm [shape: f32[2,32,512], index: 0, kind: input, shape index: {}]
  %s1 = inlined_call_operand.vmem [shape: f32[32,2], index: 1, kind: input, shape index: {}]
  %s2 = inlined_call_operand.vmem [shape: f32[1,2], index: 2, kind: input, shape index: {}]
  %s3 = inlined_call_operand.vmem [shape: f32[32,2], index: 3, kind: input, shape index: {}]
  %s4 = inlined_call_operand.vmem [shape: f32[32,1], index: 4, kind: input, shape index: {}]
  %s5 = inlined_call_operand.vmem [shape: f32[32,1], index: 5, kind: input, shape index: {}]
  %s6 = inlined_call_operand.<no memory space> [shape: f32[1,1], index: 6, kind: input, shape index: {}]
  %s7 = inlined_call_operand.hbm [shape: f32[2,32,512], index: 7, kind: output, shape index: {}]
  %s8 = sld [smem:[#allocation0]]
  $region65: #{tpu_custom_call.1} parent=0
    _
  %s10 = ssub.s32 1, %s8
  %s11 = scalar_select 0, %s10, %s8
  %v12 = vstv %s6
  %13 = vst [vmem:[#allocation2] sm:$0x1] %v12
  $region1: #{tpu_custom_call.1} parent=0
    #allocation3 [shape = 'u8[131072]{0}', space=vmem, size = 0x20000, scoped, tag = 'input window, operand 0']
    #allocation4 [shape = 's32[2]{0}', space=sflag, size = 0x8, scoped, tag = 'scoped memory for tpu_custom_call.1']
    #allocation5 [shape = 's32[2]{0}', space=sflag, size = 0x8, scoped, tag = 'scoped memory for tpu_custom_call.1']
    #allocation6 [shape = 'u8[131072]{0}', space=vmem, size = 0x20000, scoped, tag = 'output window, operand 0']
    %14 = vsyncpa [#allocation4], 0
    %s15 = scalar_lea.sflag [#allocation4], 1
    %16 = vsyncpa %s15, 0
    %17 = vsyncpa [#allocation5], 0
    %s18 = scalar_lea.sflag [#allocation5], 1
    %19 = vsyncpa %s18, 0
    loop: start=0, step=1, limit=4
    $region2: #{tpu_custom_call.1} parent=1 // loop_pre_header
      _
    $region3: #{tpu_custom_call.1} parent=1 // loop_header
      %s21 = sphi 0, %s25
      %p22 = scmp.ge.s32.totalorder %s21, 4
      %s31 = sphi 0, %s33
      %s34 = sphi 0, %s31
      %s35 = sphi 0, %s34
      %s51 = sphi 0, %s35
      %s55 = sphi 0, %s55
      %s57 = sphi 0, %s55
      %s58 = sphi 0, %s57
      %s72 = sphi 0, %s58
      %s76 = sphi 0, %s76
      %s78 = sphi 0, %s76
      %s79 = sphi 0, %s78
      %s93 = sphi 0, %s79
      %s97 = sphi 0, %s97
      %s99 = sphi 0, %s97
      %s100 = sphi 0, %s99
      %s114 = sphi 0, %s100
      %s118 = sphi 0, %s118
      %s120 = sphi 0, %s118
      %s121 = sphi 0, %s120
      %s135 = sphi 0, %s121
      %s139 = sphi 0, %s139
      %s141 = sphi 0, %s139
      %s142 = sphi 0, %s141
      %s156 = sphi 0, %s142
      %s160 = sphi 0, %s160
      %s162 = sphi 0, %s160
      %s163 = sphi 0, %s162
      %s177 = sphi 0, %s163
      %s183 = sphi 0, %s185
      %s186 = sphi 0, %s183
      %s187 = sphi 0, %s186
      %s203 = sphi 0, %s187
    $region4: #{tpu_custom_call.1} parent=1 // loop_header_branch
      %24 = sbr.rel (%p22) target = $region8
    $region5: #{tpu_custom_call.1} parent=1 // loop_body
      %s26 = ssub.s32 %s21, 1
      %s27 = ssub.s32 %s21, 2
      %s28 = sadd.s32 %s21, 1
      %s29 = ssub.s32 %s21, %s28
      %p30 = scmp.eq.s32.totalorder %s29, 0
      %s32 = sadd.s32 %s31, 1
      %s33 = scalar_select %p30, %s31, %s32
      %p36 = pneg %p30
      %p37 = scmp.eq.s32.totalorder %s21, 1
      %p38 = por %p36, %p37
      %p39 = scmp.ne.s32.totalorder %s31, %s34
      %p40 = scmp.eq.s32.totalorder %s21, 0
      %p41 = por %p39, %p40
      %p42 = scmp.ne.s32.totalorder %s31, %s34
      %p43 = scmp.eq.s32.totalorder %s26, 1
      %p44 = por %p42, %p43
      %p45 = scmp.ne.s32.totalorder %s34, %s35
      %p46 = scmp.eq.s32.totalorder %s26, 0
      %p47 = por %p45, %p46
      %p48 = scmp.ne.s32.totalorder %s34, %s35
      %p49 = scmp.eq.s32.totalorder %s27, 1
      %p50 = por %p48, %p49
      %p52 = scmp.ne.s32.totalorder %s35, %s51
      %p53 = scmp.eq.s32.totalorder %s27, 0
      %p54 = por %p52, %p53
      %s56 = sadd.s32 %s55, 1
      %p59 = scmp.eq.s32.totalorder %s21, 1
      %p60 = scmp.ne.s32.totalorder %s55, %s57
      %p61 = scmp.eq.s32.totalorder %s21, 0
      %p62 = por %p60, %p61
      %p63 = scmp.ne.s32.totalorder %s55, %s57
      %p64 = scmp.eq.s32.totalorder %s26, 1
      %p65 = por %p63, %p64
      %p66 = scmp.ne.s32.totalorder %s57, %s58
      %p67 = scmp.eq.s32.totalorder %s26, 0
      %p68 = por %p66, %p67
      %p69 = scmp.ne.s32.totalorder %s57, %s58
      %p70 = scmp.eq.s32.totalorder %s27, 1
      %p71 = por %p69, %p70
      %p73 = scmp.ne.s32.totalorder %s58, %s72
      %p74 = scmp.eq.s32.totalorder %s27, 0
      %p75 = por %p73, %p74
      %s77 = sadd.s32 %s76, 1
      %p80 = scmp.eq.s32.totalorder %s21, 1
      %p81 = scmp.ne.s32.totalorder %s76, %s78
      %p82 = scmp.eq.s32.totalorder %s21, 0
      %p83 = por %p81, %p82
      %p84 = scmp.ne.s32.totalorder %s76, %s78
      %p85 = scmp.eq.s32.totalorder %s26, 1
      %p86 = por %p84, %p85
      %p87 = scmp.ne.s32.totalorder %s78, %s79
      %p88 = scmp.eq.s32.totalorder %s26, 0
      %p89 = por %p87, %p88
      %p90 = scmp.ne.s32.totalorder %s78, %s79
      %p91 = scmp.eq.s32.totalorder %s27, 1
      %p92 = por %p90, %p91
      %p94 = scmp.ne.s32.totalorder %s79, %s93
      %p95 = scmp.eq.s32.totalorder %s27, 0
      %p96 = por %p94, %p95
      %s98 = sadd.s32 %s97, 1
      %p101 = scmp.eq.s32.totalorder %s21, 1
      %p102 = scmp.ne.s32.totalorder %s97, %s99
      %p103 = scmp.eq.s32.totalorder %s21, 0
      %p104 = por %p102, %p103
      %p105 = scmp.ne.s32.totalorder %s97, %s99
      %p106 = scmp.eq.s32.totalorder %s26, 1
      %p107 = por %p105, %p106
      %p108 = scmp.ne.s32.totalorder %s99, %s100
      %p109 = scmp.eq.s32.totalorder %s26, 0
      %p110 = por %p108, %p109
      %p111 = scmp.ne.s32.totalorder %s99, %s100
      %p112 = scmp.eq.s32.totalorder %s27, 1
      %p113 = por %p111, %p112
      %p115 = scmp.ne.s32.totalorder %s100, %s114
      %p116 = scmp.eq.s32.totalorder %s27, 0
      %p117 = por %p115, %p116
      %s119 = sadd.s32 %s118, 1
      %p122 = scmp.eq.s32.totalorder %s21, 1
      %p123 = scmp.ne.s32.totalorder %s118, %s120
      %p124 = scmp.eq.s32.totalorder %s21, 0
      %p125 = por %p123, %p124
      %p126 = scmp.ne.s32.totalorder %s118, %s120
      %p127 = scmp.eq.s32.totalorder %s26, 1
      %p128 = por %p126, %p127
      %p129 = scmp.ne.s32.totalorder %s120, %s121
      %p130 = scmp.eq.s32.totalorder %s26, 0
      %p131 = por %p129, %p130
      %p132 = scmp.ne.s32.totalorder %s120, %s121
      %p133 = scmp.eq.s32.totalorder %s27, 1
      %p134 = por %p132, %p133
      %p136 = scmp.ne.s32.totalorder %s121, %s135
      %p137 = scmp.eq.s32.totalorder %s27, 0
      %p138 = por %p136, %p137
      %s140 = sadd.s32 %s139, 1
      %p143 = scmp.eq.s32.totalorder %s21, 1
      %p144 = scmp.ne.s32.totalorder %s139, %s141
      %p145 = scmp.eq.s32.totalorder %s21, 0
      %p146 = por %p144, %p145
      %p147 = scmp.ne.s32.totalorder %s139, %s141
      %p148 = scmp.eq.s32.totalorder %s26, 1
      %p149 = por %p147, %p148
      %p150 = scmp.ne.s32.totalorder %s141, %s142
      %p151 = scmp.eq.s32.totalorder %s26, 0
      %p152 = por %p150, %p151
      %p153 = scmp.ne.s32.totalorder %s141, %s142
      %p154 = scmp.eq.s32.totalorder %s27, 1
      %p155 = por %p153, %p154
      %p157 = scmp.ne.s32.totalorder %s142, %s156
      %p158 = scmp.eq.s32.totalorder %s27, 0
      %p159 = por %p157, %p158
      %s161 = sadd.s32 %s160, 1
      %p164 = scmp.eq.s32.totalorder %s21, 1
      %p165 = scmp.ne.s32.totalorder %s160, %s162
      %p166 = scmp.eq.s32.totalorder %s21, 0
      %p167 = por %p165, %p166
      %p168 = scmp.ne.s32.totalorder %s160, %s162
      %p169 = scmp.eq.s32.totalorder %s26, 1
      %p170 = por %p168, %p169
      %p171 = scmp.ne.s32.totalorder %s162, %s163
      %p172 = scmp.eq.s32.totalorder %s26, 0
      %p173 = por %p171, %p172
      %p174 = scmp.ne.s32.totalorder %s162, %s163
      %p175 = scmp.eq.s32.totalorder %s27, 1
      %p176 = por %p174, %p175
      %p178 = scmp.ne.s32.totalorder %s163, %s177
      %p179 = scmp.eq.s32.totalorder %s27, 0
      %p180 = por %p178, %p179
      %s181 = ssub.s32 %s21, %s28
      %p182 = scmp.eq.s32.totalorder %s181, 0
      %s184 = sadd.s32 %s183, 1
      %s185 = scalar_select %p182, %s183, %s184
      %p188 = pneg %p182
      %p189 = scmp.eq.s32.totalorder %s21, 1
      %p190 = por %p188, %p189
      %p191 = scmp.ne.s32.totalorder %s183, %s186
      %p192 = scmp.eq.s32.totalorder %s21, 0
      %p193 = por %p191, %p192
      %p194 = scmp.ne.s32.totalorder %s183, %s186
      %p195 = scmp.eq.s32.totalorder %s26, 1
      %p196 = por %p194, %p195
      %p197 = scmp.ne.s32.totalorder %s186, %s187
      %p198 = scmp.eq.s32.totalorder %s26, 0
      %p199 = por %p197, %p198
      %p200 = scmp.ne.s32.totalorder %s186, %s187
      %p201 = scmp.eq.s32.totalorder %s27, 1
      %p202 = por %p200, %p201
      %p204 = scmp.ne.s32.totalorder %s187, %s203
      %p205 = scmp.eq.s32.totalorder %s27, 0
      %p206 = por %p204, %p205
      %p207 = scmp.le.s32.totalorder 1, %s21
      %p208 = scmp.lt.s32.totalorder %s21, 3
      %p209 = pnand %p207, %p208
      %p210 = pneg %p209
      // Predicated region
      $region9: #{tpu_custom_call.1} parent=5 // pred_check
        _
      $region10: #{tpu_custom_call.1} parent=5 // pred_check_branch
        %212 = sbr.rel (%p209) target = $region12
      $region11: #{tpu_custom_call.1} parent=5 // pred_region
        %s213 = ssub.s32 %s21, 1
        // Predicated region
        $region13: #{tpu_custom_call.1} parent=11 // pred_check
          %p214 = pneg %p68
        $region14: #{tpu_custom_call.1} parent=11 // pred_check_branch
          %216 = sbr.rel (%p214) target = $region16
        $region15: #{tpu_custom_call.1} parent=11 // pred_region
          _
        $region16: #{tpu_custom_call.1} parent=11 // pred_fallthru
          _
        // Predicated region
        $region17: #{tpu_custom_call.1} parent=11 // pred_check
          %p217 = pneg %p89
        $region18: #{tpu_custom_call.1} parent=11 // pred_check_branch
          %219 = sbr.rel (%p217) target = $region20
        $region19: #{tpu_custom_call.1} parent=11 // pred_region
          _
        $region20: #{tpu_custom_call.1} parent=11 // pred_fallthru
          _
        // Predicated region
        $region21: #{tpu_custom_call.1} parent=11 // pred_check
          %p220 = pneg %p110
        $region22: #{tpu_custom_call.1} parent=11 // pred_check_branch
          %222 = sbr.rel (%p220) target = $region24
        $region23: #{tpu_custom_call.1} parent=11 // pred_region
          _
        $region24: #{tpu_custom_call.1} parent=11 // pred_fallthru
          _
        // Predicated region
        $region25: #{tpu_custom_call.1} parent=11 // pred_check
          %p223 = pneg %p131
        $region26: #{tpu_custom_call.1} parent=11 // pred_check_branch
          %225 = sbr.rel (%p223) target = $region28
        $region27: #{tpu_custom_call.1} parent=11 // pred_region
          _
        $region28: #{tpu_custom_call.1} parent=11 // pred_fallthru
          _
        // Predicated region
        $region29: #{tpu_custom_call.1} parent=11 // pred_check
          %p226 = pneg %p152
        $region30: #{tpu_custom_call.1} parent=11 // pred_check_branch
          %228 = sbr.rel (%p226) target = $region32
        $region31: #{tpu_custom_call.1} parent=11 // pred_region
          _
        $region32: #{tpu_custom_call.1} parent=11 // pred_fallthru
          _
        // Predicated region
        $region33: #{tpu_custom_call.1} parent=11 // pred_check
          %p229 = pneg %p173
        $region34: #{tpu_custom_call.1} parent=11 // pred_check_branch
          %231 = sbr.rel (%p229) target = $region36
        $region35: #{tpu_custom_call.1} parent=11 // pred_region
          _
        $region36: #{tpu_custom_call.1} parent=11 // pred_fallthru
          _
      $region12: #{tpu_custom_call.1} parent=5 // pred_fallthru
        _
      %p232 = scmp.lt.s32.totalorder %s21, 2
      // Predicated region
      $region37: #{tpu_custom_call.1} parent=5 // pred_check
        %p233 = pneg %p232
      $region38: #{tpu_custom_call.1} parent=5 // pred_check_branch
        %235 = sbr.rel (%p233) target = $region40
      $region39: #{tpu_custom_call.1} parent=5 // pred_region
        // Predicated region
        $region41: #{tpu_custom_call.1} parent=39 // pred_check
          %p236 = pneg %p41
        $region42: #{tpu_custom_call.1} parent=39 // pred_check_branch
          %238 = sbr.rel (%p236) target = $region44
        $region43: #{tpu_custom_call.1} parent=39 // pred_region
          %s239 = sand.u32 %s31, 1
          %s240 = scalar_lea.sflag [#allocation4], %s239
          %s241 = sand.u32 %s31, 1
          %s242 = smul.addr %s241, 128
          %s243 = scalar_lea.vmem [#allocation3], %s242
          %245 = vsyncadd %s240, 0
          %s246 = smul.addr %s21, 16
          %s247 = smul.addr %s246, 8
          %s248 = scalar_lea.hbm %s0, %s247
          %s249 = sshll.u32 %s248, 4
          %s250 = int_to_ptr.hbm [resolvable:$true] %s249
          %s251 = sshll.u32 %s243, 4
          %s252 = int_to_ptr.vmem [resolvable:$true] %s251
          %257 = dma.hbm_to_vmem [thread:$0]  %s250, 2048, %s252, %s240, 512, 512, 32
        $region44: #{tpu_custom_call.1} parent=39 // pred_fallthru
          _
      $region40: #{tpu_custom_call.1} parent=5 // pred_fallthru
        _
      %p258 = scmp.le.s32.totalorder 1, %s21
      %p259 = scmp.lt.s32.totalorder %s21, 3
      %p260 = pnand %p258, %p259
      %p261 = pneg %p260
      // Predicated region
      $region45: #{tpu_custom_call.1} parent=5 // pred_check
        _
      $region46: #{tpu_custom_call.1} parent=5 // pred_check_branch
        %263 = sbr.rel (%p260) target = $region48
      $region47: #{tpu_custom_call.1} parent=5 // pred_region
        %s264 = ssub.s32 %s21, 1
        %s265 = sand.u32 %s34, 1
        %s266 = scalar_lea.sflag [#allocation4], %s265
        %s267 = sand.u32 %s34, 1
        %s268 = smul.addr %s267, 128
        %s269 = scalar_lea.vmem [#allocation3], %s268
        // Predicated region
        $region49: #{tpu_custom_call.1} parent=47 // pred_check
          %p270 = pneg %p47
        $region50: #{tpu_custom_call.1} parent=47 // pred_check_branch
          %272 = sbr.rel (%p270) target = $region52
        $region51: #{tpu_custom_call.1} parent=47 // pred_region
          %274 = dma.done %s266, 2048
        $region52: #{tpu_custom_call.1} parent=47 // pred_fallthru
          _
        %s275 = sand.u32 %s34, 1
        %s276 = scalar_lea.sflag [#allocation4], %s275
        %s277 = sand.u32 %s34, 1
        %s278 = smul.addr %s277, 128
        %s279 = scalar_lea.vmem [#allocation3], %s278
        %p280 = pneg %p47
        %p281 = pneg %p44
        %p282 = pneg %p68
        %p283 = pneg %p65
        %p284 = pneg %p89
        %p285 = pneg %p86
        %p286 = pneg %p110
        %p287 = pneg %p107
        %p288 = pneg %p131
        %p289 = pneg %p128
        %p290 = pneg %p152
        %p291 = pneg %p149
        %p292 = pneg %p173
        %p293 = pneg %p170
        %p294 = pneg %p199
        %p295 = pneg %p196
        %s296 = sand.u32 %s186, 1
        %s297 = scalar_lea.sflag [#allocation5], %s296
        %s298 = sand.u32 %s186, 1
        %s299 = smul.addr %s298, 128
        %s300 = scalar_lea.vmem [#allocation6], %s299
        %v301 = vld [vmem:[%s269] sm:$0xff]
        %v302 = vld [vmem:[%s269 + $0x8] sm:$0xff]
        %v303 = vld [vmem:[%s269 + $0x10] sm:$0xff]
        %v304 = vld [vmem:[%s269 + $0x18] sm:$0xff]
        %v305 = vld [vmem:[%s269 + $0x20] sm:$0xff]
        %v306 = vld [vmem:[%s269 + $0x28] sm:$0xff]
        %v307 = vld [vmem:[%s269 + $0x30] sm:$0xff]
        %v308 = vld [vmem:[%s269 + $0x38] sm:$0xff]
        %v309 = vld [vmem:[%s269 + $0x40] sm:$0xff]
        %v310 = vld [vmem:[%s269 + $0x48] sm:$0xff]
        %v311 = vld [vmem:[%s269 + $0x50] sm:$0xff]
        %v312 = vld [vmem:[%s269 + $0x58] sm:$0xff]
        %v313 = vld [vmem:[%s269 + $0x60] sm:$0xff]
        %v314 = vld [vmem:[%s269 + $0x68] sm:$0xff]
        %v315 = vld [vmem:[%s269 + $0x70] sm:$0xff]
        %v316 = vld [vmem:[%s269 + $0x78] sm:$0xff]
        %v317 = vadd.f32 %v301, %v302
        %v318 = vadd.f32 %v317, %v303
        %v319 = vadd.f32 %v318, %v304
        %320 = vadd.xlane.f32.xlu0 %v319
        %v321 = vpop.xlane.xlu0 %320
        %v322 = vadd.f32 %v305, %v306
        %v323 = vadd.f32 %v322, %v307
        %v324 = vadd.f32 %v323, %v308
        %325 = vadd.xlane.f32.xlu0 %v324
        %v326 = vpop.xlane.xlu0 %325
        %v327 = vadd.f32 %v309, %v310
        %v328 = vadd.f32 %v327, %v311
        %v329 = vadd.f32 %v328, %v312
        %330 = vadd.xlane.f32.xlu0 %v329
        %v331 = vpop.xlane.xlu0 %330
        %v332 = vadd.f32 %v313, %v314
        %v333 = vadd.f32 %v332, %v315
        %v334 = vadd.f32 %v333, %v316
        %335 = vadd.xlane.f32.xlu0 %v334
        %v336 = vpop.xlane.xlu0 %335
        %v337 = vmul.f32 %v321, 0.001953125
        %v338 = vmul.f32 %v326, 0.001953125
        %v339 = vmul.f32 %v331, 0.001953125
        %v340 = vmul.f32 %v336, 0.001953125
        %v341 = vld [vmem:[%s1] sm:$0xff]
        %v342 = vld [vmem:[%s1 + $0x8] sm:$0xff]
        %v343 = vld [vmem:[%s1 + $0x10] sm:$0xff]
        %v344 = vld [vmem:[%s1 + $0x18] sm:$0xff]
        %v345 = vmul.f32 %v341, %v337
        %v346 = vmul.f32 %v342, %v338
        %v347 = vmul.f32 %v343, %v339
        %v348 = vmul.f32 %v344, %v340
        %vm349 = vcmask 15360
        %v350 = vsel %vm349, %v345, 0.0
        %v351 = vsel %vm349, %v346, 0.0
        %v352 = vadd.f32 %v350, %v351
        %v353 = vsel %vm349, %v347, 0.0
        %v354 = vadd.f32 %v352, %v353
        %v355 = vsel %vm349, %v348, 0.0
        %v356 = vadd.f32 %v354, %v355
        %v357 = vrot.slane %v356, 4
        %v358 = vadd.f32 %v356, %v357
        %v359 = vrot.slane %v358, 2
        %v360 = vadd.f32 %v358, %v359
        %v361 = vrot.slane %v360, 1
        %v362 = vadd.f32 %v360, %v361
        %v363 = vld [vmem:[%s2] sm:$0x1]
        %v364 = vadd.f32 %v362, %v363
        %v365 = vmax.f32 %v364, 0.0
        %v366 = vld [vmem:[%s3] sm:$0xff]
        %v367 = vld [vmem:[%s3 + $0x8] sm:$0xff]
        %v368 = vld [vmem:[%s3 + $0x10] sm:$0xff]
        %v369 = vld [vmem:[%s3 + $0x18] sm:$0xff]
        %v370 = vperm.slane %v365, 0
        %v371 = vmul.f32 %v366, %v370
        %v372 = vmul.f32 %v367, %v370
        %v373 = vmul.f32 %v368, %v370
        %v374 = vmul.f32 %v369, %v370
        %v375 = vsel %vm349, %v371, 0.0
        %376 = vadd.xlane.f32.xlu0 %v375
        %v377 = vpop.xlane.xlu0 %376
        %v378 = vsel %vm349, %v372, 0.0
        %379 = vadd.xlane.f32.xlu0 %v378
        %v380 = vpop.xlane.xlu0 %379
        %v381 = vsel %vm349, %v373, 0.0
        %382 = vadd.xlane.f32.xlu0 %v381
        %v383 = vpop.xlane.xlu0 %382
        %v384 = vsel %vm349, %v374, 0.0
        %385 = vadd.xlane.f32.xlu0 %v384
        %v386 = vpop.xlane.xlu0 %385
        %v387 = vld [vmem:[%s4] sm:$0xff]
        %v388 = vld [vmem:[%s4 + $0x8] sm:$0xff]
        %v389 = vld [vmem:[%s4 + $0x10] sm:$0xff]
        %v390 = vld [vmem:[%s4 + $0x18] sm:$0xff]
        %v391 = vadd.f32 %v377, %v387
        %v392 = vadd.f32 %v380, %v388
        %v393 = vadd.f32 %v383, %v389
        %v394 = vadd.f32 %v386, %v390
        %v395 = vxor.u32 %v391, 2147483648
        %v396 = vxor.u32 %v392, 2147483648
        %v397 = vxor.u32 %v393, 2147483648
        %v398 = vxor.u32 %v394, 2147483648
        %v399 = vmul.f32 %v395, 1.442695
        %v400 = vpow.pop %v399
        %v401 = vmul.f32 %v396, 1.442695
        %v402 = vpow.pop %v401
        %v403 = vmul.f32 %v397, 1.442695
        %v404 = vpow.pop %v403
        %v405 = vmul.f32 %v398, 1.442695
        %v406 = vpow.pop %v405
        %v407 = vadd.f32 %v400, 1.0
        %v408 = vadd.f32 %v402, 1.0
        %v409 = vadd.f32 %v404, 1.0
        %v410 = vadd.f32 %v406, 1.0
        %v411 = vrcp.pop %v407
        %v412 = vmul.f32 %v407, %v411
        %v413 = vsub.f32 1.0, %v412
        %v414 = vmul.f32 %v411, %v413
        %v415 = vadd.f32 %v411, %v414
        %vm416 = vweird.f32 %v407
        %vm417 = vweird.f32 %v411
        %vm418 = vmor %vm416, %vm417
        %v419 = vsel %vm418, %v411, %v415
        %v420 = vand.u32 2147483647, %v407
        %vm421 = vcmp.eq.f32.partialorder %v420, 8.507059e+37
        %v422 = vand.u32 %v407, 2147483648
        %v423 = vor.u32 1.1754944e-38, %v422
        %v424 = vsel %vm421, %v423, %v419
        %v425 = vmul.f32 1.0, %v424
        %v426 = vrcp.pop %v408
        %v427 = vmul.f32 %v408, %v426
        %v428 = vsub.f32 1.0, %v427
        %v429 = vmul.f32 %v426, %v428
        %v430 = vadd.f32 %v426, %v429
        %vm431 = vweird.f32 %v408
        %vm432 = vweird.f32 %v426
        %vm433 = vmor %vm431, %vm432
        %v434 = vsel %vm433, %v426, %v430
        %v435 = vand.u32 2147483647, %v408
        %vm436 = vcmp.eq.f32.partialorder %v435, 8.507059e+37
        %v437 = vand.u32 %v408, 2147483648
        %v438 = vor.u32 1.1754944e-38, %v437
        %v439 = vsel %vm436, %v438, %v434
        %v440 = vmul.f32 1.0, %v439
        %v441 = vrcp.pop %v409
        %v442 = vmul.f32 %v409, %v441
        %v443 = vsub.f32 1.0, %v442
        %v444 = vmul.f32 %v441, %v443
        %v445 = vadd.f32 %v441, %v444
        %vm446 = vweird.f32 %v409
        %vm447 = vweird.f32 %v441
        %vm448 = vmor %vm446, %vm447
        %v449 = vsel %vm448, %v441, %v445
        %v450 = vand.u32 2147483647, %v409
        %vm451 = vcmp.eq.f32.partialorder %v450, 8.507059e+37
        %v452 = vand.u32 %v409, 2147483648
        %v453 = vor.u32 1.1754944e-38, %v452
        %v454 = vsel %vm451, %v453, %v449
        %v455 = vmul.f32 1.0, %v454
        %v456 = vrcp.pop %v410
        %v457 = vmul.f32 %v410, %v456
        %v458 = vsub.f32 1.0, %v457
        %v459 = vmul.f32 %v456, %v458
        %v460 = vadd.f32 %v456, %v459
        %vm461 = vweird.f32 %v410
        %vm462 = vweird.f32 %v456
        %vm463 = vmor %vm461, %vm462
        %v464 = vsel %vm463, %v456, %v460
        %v465 = vand.u32 2147483647, %v410
        %vm466 = vcmp.eq.f32.partialorder %v465, 8.507059e+37
        %v467 = vand.u32 %v410, 2147483648
        %v468 = vor.u32 1.1754944e-38, %v467
        %v469 = vsel %vm466, %v468, %v464
        %v470 = vmul.f32 1.0, %v469
        %v471 = vld [vmem:[%s5] sm:$0xff]
        %v472 = vld [vmem:[%s5 + $0x8] sm:$0xff]
        %v473 = vld [vmem:[%s5 + $0x10] sm:$0xff]
        %v474 = vld [vmem:[%s5 + $0x18] sm:$0xff]
        %476 = vset.pattern.permute.xlu0 0
        %477 = vperm.xlu0 %476, %v471
        %v478 = vpop.permute.xlu0 %477
        %481 = vset.pattern.permute.xlu0 0
        %482 = vperm.xlu0 %481, %v472
        %v483 = vpop.permute.xlu0 %482
        %486 = vset.pattern.permute.xlu0 0
        %487 = vperm.xlu0 %486, %v473
        %v488 = vpop.permute.xlu0 %487
        %491 = vset.pattern.permute.xlu0 0
        %492 = vperm.xlu0 %491, %v474
        %v493 = vpop.permute.xlu0 %492
        %v495 = vmul.f32 %v301, %v478
        %v496 = vmul.f32 %v302, %v478
        %v497 = vmul.f32 %v303, %v478
        %v498 = vmul.f32 %v304, %v478
        %v499 = vmul.f32 %v305, %v483
        %v500 = vmul.f32 %v306, %v483
        %v501 = vmul.f32 %v307, %v483
        %v502 = vmul.f32 %v308, %v483
        %v503 = vmul.f32 %v309, %v488
        %v504 = vmul.f32 %v310, %v488
        %v505 = vmul.f32 %v311, %v488
        %v506 = vmul.f32 %v312, %v488
        %v507 = vmul.f32 %v313, %v493
        %v508 = vmul.f32 %v314, %v493
        %v509 = vmul.f32 %v315, %v493
        %v510 = vmul.f32 %v316, %v493
        %v511 = vadd.f32 %v495, %v499
        %v512 = vadd.f32 %v511, %v503
        %v513 = vadd.f32 %v512, %v507
        %v514 = vrot.slane %v513, 4
        %v515 = vadd.f32 %v513, %v514
        %v516 = vrot.slane %v515, 2
        %v517 = vadd.f32 %v515, %v516
        %v518 = vrot.slane %v517, 1
        %v519 = vadd.f32 %v517, %v518
        %v520 = vadd.f32 %v496, %v500
        %v521 = vadd.f32 %v520, %v504
        %v522 = vadd.f32 %v521, %v508
        %v523 = vrot.slane %v522, 4
        %v524 = vadd.f32 %v522, %v523
        %v525 = vrot.slane %v524, 2
        %v526 = vadd.f32 %v524, %v525
        %v527 = vrot.slane %v526, 1
        %v528 = vadd.f32 %v526, %v527
        %v529 = vadd.f32 %v497, %v501
        %v530 = vadd.f32 %v529, %v505
        %v531 = vadd.f32 %v530, %v509
        %v532 = vrot.slane %v531, 4
        %v533 = vadd.f32 %v531, %v532
        %v534 = vrot.slane %v533, 2
        %v535 = vadd.f32 %v533, %v534
        %v536 = vrot.slane %v535, 1
        %v537 = vadd.f32 %v535, %v536
        %v538 = vadd.f32 %v498, %v502
        %v539 = vadd.f32 %v538, %v506
        %v540 = vadd.f32 %v539, %v510
        %v541 = vrot.slane %v540, 4
        %v542 = vadd.f32 %v540, %v541
        %v543 = vrot.slane %v542, 2
        %v544 = vadd.f32 %v542, %v543
        %v545 = vrot.slane %v544, 1
        %v546 = vadd.f32 %v544, %v545
        %v547 = vld [vmem:[#allocation2] sm:$0x1]
        %549 = vset.pattern.permute.xlu0 0
        %550 = vperm.xlu0 %549, %v547
        %v551 = vpop.permute.xlu0 %550
        %v553 = vperm.slane %v551, 0
        %v554 = vadd.f32 %v519, %v553
        %v555 = vadd.f32 %v528, %v553
        %v556 = vadd.f32 %v537, %v553
        %v557 = vadd.f32 %v546, %v553
        %v558 = vxor.u32 %v554, 2147483648
        %v559 = vxor.u32 %v555, 2147483648
        %v560 = vxor.u32 %v556, 2147483648
        %v561 = vxor.u32 %v557, 2147483648
        %v562 = vmul.f32 %v558, 1.442695
        %v563 = vpow.pop %v562
        %v564 = vmul.f32 %v559, 1.442695
        %v565 = vpow.pop %v564
        %v566 = vmul.f32 %v560, 1.442695
        %v567 = vpow.pop %v566
        %v568 = vmul.f32 %v561, 1.442695
        %v569 = vpow.pop %v568
        %v570 = vadd.f32 %v563, 1.0
        %v571 = vadd.f32 %v565, 1.0
        %v572 = vadd.f32 %v567, 1.0
        %v573 = vadd.f32 %v569, 1.0
        %v574 = vrcp.pop %v570
        %v575 = vmul.f32 %v570, %v574
        %v576 = vsub.f32 1.0, %v575
        %v577 = vmul.f32 %v574, %v576
        %v578 = vadd.f32 %v574, %v577
        %vm579 = vweird.f32 %v570
        %vm580 = vweird.f32 %v574
        %vm581 = vmor %vm579, %vm580
        %v582 = vsel %vm581, %v574, %v578
        %v583 = vand.u32 2147483647, %v570
        %vm584 = vcmp.eq.f32.partialorder %v583, 8.507059e+37
        %v585 = vand.u32 %v570, 2147483648
        %v586 = vor.u32 1.1754944e-38, %v585
        %v587 = vsel %vm584, %v586, %v582
        %v588 = vmul.f32 1.0, %v587
        %v589 = vrcp.pop %v571
        %v590 = vmul.f32 %v571, %v589
        %v591 = vsub.f32 1.0, %v590
        %v592 = vmul.f32 %v589, %v591
        %v593 = vadd.f32 %v589, %v592
        %vm594 = vweird.f32 %v571
        %vm595 = vweird.f32 %v589
        %vm596 = vmor %vm594, %vm595
        %v597 = vsel %vm596, %v589, %v593
        %v598 = vand.u32 2147483647, %v571
        %vm599 = vcmp.eq.f32.partialorder %v598, 8.507059e+37
        %v600 = vand.u32 %v571, 2147483648
        %v601 = vor.u32 1.1754944e-38, %v600
        %v602 = vsel %vm599, %v601, %v597
        %v603 = vmul.f32 1.0, %v602
        %v604 = vrcp.pop %v572
        %v605 = vmul.f32 %v572, %v604
        %v606 = vsub.f32 1.0, %v605
        %v607 = vmul.f32 %v604, %v606
        %v608 = vadd.f32 %v604, %v607
        %vm609 = vweird.f32 %v572
        %vm610 = vweird.f32 %v604
        %vm611 = vmor %vm609, %vm610
        %v612 = vsel %vm611, %v604, %v608
        %v613 = vand.u32 2147483647, %v572
        %vm614 = vcmp.eq.f32.partialorder %v613, 8.507059e+37
        %v615 = vand.u32 %v572, 2147483648
        %v616 = vor.u32 1.1754944e-38, %v615
        %v617 = vsel %vm614, %v616, %v612
        %v618 = vmul.f32 1.0, %v617
        %v619 = vrcp.pop %v573
        %v620 = vmul.f32 %v573, %v619
        %v621 = vsub.f32 1.0, %v620
        %v622 = vmul.f32 %v619, %v621
        %v623 = vadd.f32 %v619, %v622
        %vm624 = vweird.f32 %v573
        %vm625 = vweird.f32 %v619
        %vm626 = vmor %vm624, %vm625
        %v627 = vsel %vm626, %v619, %v623
        %v628 = vand.u32 2147483647, %v573
        %vm629 = vcmp.eq.f32.partialorder %v628, 8.507059e+37
        %v630 = vand.u32 %v573, 2147483648
        %v631 = vor.u32 1.1754944e-38, %v630
        %v632 = vsel %vm629, %v631, %v627
        %v633 = vmul.f32 1.0, %v632
        %635 = vset.pattern.permute.xlu0 0
        %636 = vperm.xlu0 %635, %v425
        %v637 = vpop.permute.xlu0 %636
        %640 = vset.pattern.permute.xlu0 0
        %641 = vperm.xlu0 %640, %v440
        %v642 = vpop.permute.xlu0 %641
        %645 = vset.pattern.permute.xlu0 0
        %646 = vperm.xlu0 %645, %v455
        %v647 = vpop.permute.xlu0 %646
        %650 = vset.pattern.permute.xlu0 0
        %651 = vperm.xlu0 %650, %v470
        %v652 = vpop.permute.xlu0 %651
        %v654 = vadd.f32 %v637, %v588
        %v655 = vadd.f32 %v637, %v603
        %v656 = vadd.f32 %v637, %v618
        %v657 = vadd.f32 %v637, %v633
        %v658 = vadd.f32 %v642, %v588
        %v659 = vadd.f32 %v642, %v603
        %v660 = vadd.f32 %v642, %v618
        %v661 = vadd.f32 %v642, %v633
        %v662 = vadd.f32 %v647, %v588
        %v663 = vadd.f32 %v647, %v603
        %v664 = vadd.f32 %v647, %v618
        %v665 = vadd.f32 %v647, %v633
        %v666 = vadd.f32 %v652, %v588
        %v667 = vadd.f32 %v652, %v603
        %v668 = vadd.f32 %v652, %v618
        %v669 = vadd.f32 %v652, %v633
        %v670 = vmul.f32 %v301, %v654
        %v671 = vmul.f32 %v302, %v655
        %v672 = vmul.f32 %v303, %v656
        %v673 = vmul.f32 %v304, %v657
        %v674 = vmul.f32 %v305, %v658
        %v675 = vmul.f32 %v306, %v659
        %v676 = vmul.f32 %v307, %v660
        %v677 = vmul.f32 %v308, %v661
        %v678 = vmul.f32 %v309, %v662
        %v679 = vmul.f32 %v310, %v663
        %v680 = vmul.f32 %v311, %v664
        %v681 = vmul.f32 %v312, %v665
        %v682 = vmul.f32 %v313, %v666
        %v683 = vmul.f32 %v314, %v667
        %v684 = vmul.f32 %v315, %v668
        %v685 = vmul.f32 %v316, %v669
        %686 = vst [vmem:[%s300] sm:$0xff] %v670
        %687 = vst [vmem:[%s300 + $0x8] sm:$0xff] %v671
        %688 = vst [vmem:[%s300 + $0x10] sm:$0xff] %v672
        %689 = vst [vmem:[%s300 + $0x18] sm:$0xff] %v673
        %690 = vst [vmem:[%s300 + $0x20] sm:$0xff] %v674
        %691 = vst [vmem:[%s300 + $0x28] sm:$0xff] %v675
        %692 = vst [vmem:[%s300 + $0x30] sm:$0xff] %v676
        %693 = vst [vmem:[%s300 + $0x38] sm:$0xff] %v677
        %694 = vst [vmem:[%s300 + $0x40] sm:$0xff] %v678
        %695 = vst [vmem:[%s300 + $0x48] sm:$0xff] %v679
        %696 = vst [vmem:[%s300 + $0x50] sm:$0xff] %v680
        %697 = vst [vmem:[%s300 + $0x58] sm:$0xff] %v681
        %698 = vst [vmem:[%s300 + $0x60] sm:$0xff] %v682
        %699 = vst [vmem:[%s300 + $0x68] sm:$0xff] %v683
        %700 = vst [vmem:[%s300 + $0x70] sm:$0xff] %v684
        %701 = vst [vmem:[%s300 + $0x78] sm:$0xff] %v685
        %s702 = sand.u32 %s186, 1
        %s703 = scalar_lea.sflag [#allocation5], %s702
        %s704 = sand.u32 %s186, 1
        %s705 = smul.addr %s704, 128
        %s706 = scalar_lea.vmem [#allocation6], %s705
        // Predicated region
        $region53: #{tpu_custom_call.1} parent=47 // pred_check
          %p707 = pneg %p196
        $region54: #{tpu_custom_call.1} parent=47 // pred_check_branch
          %709 = sbr.rel (%p707) target = $region56
        $region55: #{tpu_custom_call.1} parent=47 // pred_region
          %711 = vsyncadd %s703, 0
          %s712 = smul.addr %s26, 16
          %s713 = smul.addr %s712, 8
          %s714 = scalar_lea.hbm %s7, %s713
          %s715 = sshll.u32 %s706, 4
          %s716 = int_to_ptr.vmem [resolvable:$true] %s715
          %s717 = sshll.u32 %s714, 4
          %s718 = int_to_ptr.hbm [resolvable:$true] %s717
          %723 = dma.vmem_to_hbm [thread:$0]  %s716, 2048, %s718, %s703, 512, 512, 32
        $region56: #{tpu_custom_call.1} parent=47 // pred_fallthru
          _
      $region48: #{tpu_custom_call.1} parent=5 // pred_fallthru
        _
      %p724 = scmp.le.s32.totalorder 2, %s21
      // Predicated region
      $region57: #{tpu_custom_call.1} parent=5 // pred_check
        %p725 = pneg %p724
      $region58: #{tpu_custom_call.1} parent=5 // pred_check_branch
        %727 = sbr.rel (%p725) target = $region60
      $region59: #{tpu_custom_call.1} parent=5 // pred_region
        %s728 = ssub.s32 %s21, 2
        // Predicated region
        $region61: #{tpu_custom_call.1} parent=59 // pred_check
          %p729 = pneg %p202
        $region62: #{tpu_custom_call.1} parent=59 // pred_check_branch
          %731 = sbr.rel (%p729) target = $region64
        $region63: #{tpu_custom_call.1} parent=59 // pred_region
          %s732 = sand.u32 %s187, 1
          %s733 = scalar_lea.sflag [#allocation5], %s732
          %s734 = sand.u32 %s187, 1
          %s735 = smul.addr %s734, 128
          %s736 = scalar_lea.vmem [#allocation6], %s735
          %738 = dma.done %s733, 2048
        $region64: #{tpu_custom_call.1} parent=59 // pred_fallthru
          _
      $region60: #{tpu_custom_call.1} parent=5 // pred_fallthru
        _
    $region6: #{tpu_custom_call.1} parent=1 // loop_footer
      %s25 = sadd.s32 1, %s21
    $region7: #{tpu_custom_call.1} parent=1 // loop_footer_branch
      %20 = sbr.rel target = $region3
    $region8: #{tpu_custom_call.1} parent=1 // loop_exit
      _
    %739 = vsyncpa [#allocation4], 1
    %s740 = scalar_lea.sflag [#allocation4], 1
    %741 = vsyncpa %s740, 1
    %742 = vsyncpa [#allocation5], 1
    %s743 = scalar_lea.sflag [#allocation5], 1
    %744 = vsyncpa %s743, 1

</llo_original>
